<compile_context>
chip_gen: v7x
topology: tpu7x:2x2x1
jax: 0.10.0
libtpu: 0.0.40
codegen_flags: <defaults>
</compile_context>

<pallas_src>
import jax
import jax.numpy as jnp
from jax import lax
from jax.experimental import pallas as pl
from jax.experimental.pallas import tpu as pltpu


# Scoped-VMEM limit.  None = per-generation default (ample for the self-test).
# For production shapes set ~96 MiB on v5e/v6e (128 MiB physical) and
# ~40-48 MiB on v7x (64 MiB physical) so larger tiles double-buffer cleanly.
VMEM_LIMIT_BYTES = None

_MAX_TILE_L = 2048                        # lane-axis tile cap for kernel_gen
_MAX_SPATIAL_TILE_BYTES = 8 * 1024 * 1024  # budget for streamed kn/out row tiles


def _round_up(x, m):
    return ((x + m - 1) // m) * m


def _pick_tile_l(Lp, max_tile=_MAX_TILE_L):
    """Largest multiple-of-128 divisor of Lp (Lp itself a multiple of 128)."""
    best, t = 128, 128
    while t <= min(Lp, max_tile):
        if Lp % t == 0:
            best = t
        t += 128
    return best


def _pick_tile_h(nH, nW, KKG, C, B, max_bytes=_MAX_SPATIAL_TILE_BYTES):
    """Divisor of nH that is a multiple of 16 (legal/sublane-friendly for the
    bf16 kn block and the f32 out block), falling back to the full nH.
    Prefers tiles giving >= 4 total grid steps (v7x: 2 TensorCores + pipeline),
    subject to a VMEM budget for the streamed kn/out row tiles."""
    cands = [t for t in range(16, nH + 1, 16) if nH % t == 0] or [nH]

    def tile_bytes(t):
        return (KKG * 2 + C * 4) * t * nW * 2   # bf16 kn + f32 out, double-buffered

    budgeted = [t for t in cands if tile_bytes(t) <= max_bytes] or [cands[0]]
    want_rows = -(-4 // max(B, 1))              # ceil(4 / B)
    multi = [t for t in budgeted if nH // t >= want_rows]
    return max(multi) if multi else max(budgeted)


# ---------------------------------------------------------------------------
# Pallas kernel 1: fused kernel_gen (1x1 conv -> BN(folded) -> ReLU -> 1x1 conv)
# Channel-first: (Cr,C)@(C,tile_l) -> relu -> (KKG,Cr)@(Cr,tile_l), bf16 MXU
# operands with f32 accumulation.  The output (B, KKG, L) is exactly the
# contiguous NCHW conv output the module .view's; it is stored in bf16.
# ---------------------------------------------------------------------------
def _kernel_gen_kernel(x_ref, w1_ref, b1_ref, w2_ref, b2_ref, o_ref):
    x = x_ref[...]                                            # (C, tile_l) bf16
    h = jnp.dot(w1_ref[...], x, preferred_element_type=jnp.float32) + b1_ref[...]
    h = jnp.maximum(h, 0.0).astype(jnp.bfloat16)              # back to bf16 for MXU
    o = jnp.dot(w2_ref[...], h, preferred_element_type=jnp.float32) + b2_ref[...]
    o_ref[...] = o.astype(o_ref.dtype)


def kernel_gen_pallas(x_cf, w1, b1, w2, b2):
    """x_cf: (B, C, L); w1: (Cr, C); b1: (Cr, 1); w2: (KKG, Cr); b2: (KKG, 1).
    Returns the contiguous (B, KKG, L) 1x1-conv-stack output in bf16."""
    B, C, L = x_cf.shape
    Cr = w1.shape[0]
    KKG = w2.shape[0]

    # Pad L to a multiple of 128 -> unmasked, lane-dense tiles; pad columns are
    # garbage-but-finite and sliced off below.
    Lp = _round_up(L, 128)
    xb = x_cf.astype(jnp.bfloat16)
    if Lp != L:
        xb = jnp.pad(xb, ((0, 0), (0, 0), (0, Lp - L)))
    w1b = w1.astype(jnp.bfloat16)
    w2b = w2.astype(jnp.bfloat16)
    b1f = b1.astype(jnp.float32)
    b2f = b2.astype(jnp.float32)

    tile_l = _pick_tile_l(Lp)
    grid = (B, Lp // tile_l)
    flops = 2 * B * Lp * (C * Cr + Cr * KKG)
    bytes_accessed = 2 * B * Lp * (C + KKG) + 2 * (Cr * C + KKG * Cr) + 4 * (Cr + KKG)

    out = pl.pallas_call(
        _kernel_gen_kernel,
        out_shape=jax.ShapeDtypeStruct((B, KKG, Lp), jnp.bfloat16),
        grid_spec=pltpu.PrefetchScalarGridSpec(
            num_scalar_prefetch=0,
            grid=grid,
            in_specs=[
                pl.BlockSpec((None, C, tile_l), lambda b, t: (b, 0, t)),
                # weight / bias blocks have constant block indices -> DMA'd once
                pl.BlockSpec((Cr, C), lambda b, t: (0, 0)),
                pl.BlockSpec((Cr, 1), lambda b, t: (0, 0)),
                pl.BlockSpec((KKG, Cr), lambda b, t: (0, 0)),
                pl.BlockSpec((KKG, 1), lambda b, t: (0, 0)),
            ],
            out_specs=pl.BlockSpec((None, KKG, tile_l), lambda b, t: (b, 0, t)),
        ),
        compiler_params=pltpu.CompilerParams(
            dimension_semantics=("parallel", "parallel"),
            vmem_limit_bytes=VMEM_LIMIT_BYTES),
        cost_estimate=pl.CostEstimate(flops=int(flops), transcendentals=0,
                                      bytes_accessed=int(bytes_accessed)),
    )(xb, w1b, b1f, w2b, b2f)
    if Lp != L:
        out = out[:, :, :L]
    return out


# ---------------------------------------------------------------------------
# Pallas kernel 2: fused unfold + involution multiply-reduce.
# Inputs:  x_ph (B, C*s*s, phH, phW)  f32  once-per-batch padded/phase input
#          kn   (B, K*K*G, nH, nW)    bf16 kernel_gen output (row-tiled)
# Output:  out  (B, C, nH, nW)        f32  final NCHW-layout output (row-tiled)
# ---------------------------------------------------------------------------
def _make_involution_kernel(*, C, G, K, stride, tile_h, nW, num_row_tiles):
    KK = K * K
    CG = C // G
    s = stride
    HH = (K - 1) // s          # halo rows / lanes beyond the output tile

    def kernel(x_ref, k_ref, o_ref):
        # x_ref: (C*s*s, phH, phW) f32 ; k_ref: (K*K*G, tile_h, nW) bf16 ;
        # o_ref: (C, tile_h, nW) f32
        if num_row_tiles == 1:
            h0 = 0
        else:
            h0 = pl.multiple_of(pl.program_id(1) * tile_h, tile_h)

        for u in range(G):                       # static unroll: G is small
            # Static per-kk index algebra (independent of the channel group cg):
            #   r = (cg*KK + kk)*G + u ; r % KK = (kk*G + u) % KK (static) ;
            #   c_in = r // KK = cg*G + d0 ; (kh, kw) = divmod(r % KK, K) ;
            #   x_ph row = (c_in*s + kh%s)*s + kw%s, spatial shift (kh//s, kw//s).
            terms = []
            for kk in range(KK):
                d0, kk0 = divmod(kk * G + u, KK)
                kh0, kw0 = divmod(kk0, K)
                oh, ph = divmod(kh0, s)
                ow, pw = divmod(kw0, s)
                roff = (d0 * s + ph) * s + pw    # row offset inside the cg block
                terms.append((roff, oh, ow, kk))
            rows = sorted({t[0] for t in terms})
            row_slot = {r: i for i, r in enumerate(rows)}

            # Hoist the K*K kernel planes of this group out of the channel
            # loop: loaded once per (row tile, u) and reused by all C//G output
            # channels (cuts kernel-plane vld traffic by C//G).  Upcast once.
            kq = [k_ref[kk * G + u, :, :].astype(jnp.float32) for kk in range(KK)]

            def cg_body(cg, carry):
                base = cg * (G * s * s)
                # One aligned halo slab per distinct input row (full phW lanes);
                # the K*K shifted views are static *value* slices of these slabs
                # instead of per-term misaligned VMEM loads.
                slabs = [x_ref[base + r, pl.ds(h0, tile_h + HH), :] for r in rows]
                acc = jnp.zeros((tile_h, nW), jnp.float32)    # register-resident
                for roff, oh, ow, kk in terms:
                    xw = slabs[row_slot[roff]][oh:oh + tile_h, ow:ow + nW]
                    acc = acc + xw * kq[kk]
                o_ref[cg * G + u, :, :] = acc.astype(o_ref.dtype)
                return carry

            # Rolled channel loop bounds trace size / live ranges at production
            # C; tiny trip counts are fully unrolled for LLO visibility.
            lax.fori_loop(0, CG, cg_body, 0, unroll=(CG <= 8))

    return kernel


def involution_pallas(x_ph, kn, *, C, G, K, stride, nH, nW):
    B = x_ph.shape[0]
    Cs2 = x_ph.shape[1]
    phH, phW = x_ph.shape[-2:]
    KKG = K * K * G
    L = nH * nW
    tile_h = _pick_tile_h(nH, nW, KKG, C, B)
    num_row_tiles = nH // tile_h
    grid = (B, num_row_tiles)
    flops = 2 * B * C * K * K * L
    bytes_accessed = 4 * B * Cs2 * phH * phW + 2 * B * KKG * L + 4 * B * C * L

    kernel = _make_involution_kernel(C=C, G=G, K=K, stride=stride,
                                     tile_h=tile_h, nW=nW,
                                     num_row_tiles=num_row_tiles)
    # Perf TODOs (not required at self-test shapes):
    #  - pack out/kn spatially so the stored last dim is a multiple of 128 when
    #    nW < 128 (lane-dense vst);
    #  - store x_ph in bf16 once packed-dtype dynamic sublane slices are not a
    #    concern;
    #  - on v7x, halo-tile the per-batch x block with manual make_async_copy
    #    instead of keeping the whole (C*s*s, phH, phW) slab double-buffered.
    return pl.pallas_call(
        kernel,
        out_shape=jax.ShapeDtypeStruct((B, C, nH, nW), jnp.float32),
        grid_spec=pltpu.PrefetchScalarGridSpec(
            num_scalar_prefetch=0,
            grid=grid,
            in_specs=[
                # full per-batch x: block index constant in t -> fetched once
                # per batch and reused across all row tiles (no K*K inflation).
                pl.BlockSpec((None, Cs2, phH, phW), lambda b, t: (b, 0, 0, 0)),
                pl.BlockSpec((None, KKG, tile_h, nW), lambda b, t: (b, 0, t, 0)),
            ],
            out_specs=pl.BlockSpec((None, C, tile_h, nW), lambda b, t: (b, 0, t, 0)),
        ),
        compiler_params=pltpu.CompilerParams(
            dimension_semantics=("parallel", "parallel"),
            vmem_limit_bytes=VMEM_LIMIT_BYTES),
        cost_estimate=pl.CostEstimate(flops=int(flops), transcendentals=0,
                                      bytes_accessed=int(bytes_accessed)),
    )(x_ph, kn)


# ---------------------------------------------------------------------------
# Plain-JAX glue (data movement only)
# ---------------------------------------------------------------------------
def avg_pool2d(x, stride):
    # Matches F.avg_pool2d(x, stride, stride, padding=(s-1)//2) with PyTorch's
    # default count_include_pad=True.
    s = stride
    pad = (s - 1) // 2
    summed = lax.reduce_window(
        x, 0.0, lax.add,
        window_dimensions=(1, 1, s, s),
        window_strides=(1, 1, s, s),
        padding=((0, 0), (0, 0), (pad, pad), (pad, pad)))
    return summed / float(s * s)


def build_phases(x, K, s):
    """x_ph[b, (c*s + ph)*s + pw, i, j] = x_pad[b, c, i*s + ph, j*s + pw].

    For s == 1 this is just x zero-padded by K//2 (the im2col source).  The
    involution kernel indexes it with static offsets, so the (B, C*K*K, L)
    patches tensor of F.unfold is never materialized in HBM."""
    B, C, H, W = x.shape
    pad = K // 2
    nH, nW = H // s, W // s
    phH = nH + (K - 1) // s
    phW = nW + (K - 1) // s
    rpad_h = max(0, s * phH - H - pad)
    rpad_w = max(0, s * phW - W - pad)
    xp = jnp.pad(x, ((0, 0), (0, 0), (pad, rpad_h), (pad, rpad_w)))
    xp = xp[:, :, :s * phH, :s * phW]
    x_ph = xp.reshape(B, C, phH, s, phW, s).transpose(0, 1, 3, 5, 2, 4)
    return x_ph.reshape(B, C * s * s, phH, phW)


def unfold(x, K, stride, pad):
    # Reference-only helper reproducing F.unfold layout.
    B, C, H, W = x.shape
    nH = (H + 2 * pad - K) // stride + 1
    nW = (W + 2 * pad - K) // stride + 1
    xp = jnp.pad(x, ((0, 0), (0, 0), (pad, pad), (pad, pad)))
    cols = []
    for kh in range(K):
        for kw in range(K):
            cols.append(xp[:, :, kh:kh + stride * nH:stride,
                               kw:kw + stride * nW:stride])
    patches = jnp.stack(cols, axis=2)                 # (B, C, K*K, nH, nW)
    return patches.reshape(B, C * K * K, nH * nW), nH, nW


def init_params(key, channel, group_number, kernel_size, reduction_ratio):
    C = channel
    Cr = C // reduction_ratio
    KKG = kernel_size * kernel_size * group_number
    k1, k2, k3, k4 = jax.random.split(key, 4)
    w1 = jax.random.normal(k1, (Cr, C), jnp.float32) * 0.1    # conv1 (out, in)
    b1 = jax.random.normal(k2, (Cr,), jnp.float32) * 0.1
    w2 = jax.random.normal(k3, (KKG, Cr), jnp.float32) * 0.1  # conv2 (out, in)
    b2 = jax.random.normal(k4, (KKG,), jnp.float32) * 0.1
    # BatchNorm2d (eval mode: gamma=1, beta=0, mean=0, var=1) folded into conv1.
    gamma = jnp.ones((Cr,), jnp.float32)
    beta = jnp.zeros((Cr,), jnp.float32)
    running_mean = jnp.zeros((Cr,), jnp.float32)
    running_var = jnp.ones((Cr,), jnp.float32)
    eps = 1e-5
    scale = gamma / jnp.sqrt(running_var + eps)
    shift = beta - running_mean * scale
    return {
        "w1f": w1 * scale[:, None],             # (Cr, C)
        "b1f": (b1 * scale + shift)[:, None],   # (Cr, 1)
        "w2": w2,                               # (KKG, Cr)
        "b2": b2[:, None],                      # (KKG, 1)
    }


# ---------------------------------------------------------------------------
# Forward pass (Pallas-backed), matching the PyTorch module semantics
# ---------------------------------------------------------------------------
def involution_forward(x, params, *, channel, group_number, kernel_size,
                       stride, reduction_ratio):
    B, C, H, W = x.shape
    G, K, s = group_number, kernel_size, stride
    nH, nW = H // s, W // s
    KK = K * K

    kernel_input = avg_pool2d(x, s) if s > 1 else x
    assert kernel_input.shape[-2:] == (nH, nW), (
        "pooled spatial size must equal (H//stride, W//stride), as the "
        "module's .view requires")

    # kernel_gen, channel-first: output (B, K*K*G, L) IS the contiguous
    # (B, K*K*G, nH, nW) conv output -> only free row-major reshapes below.
    ki_flat = kernel_input.reshape(B, C, nH * nW)
    kn_flat = kernel_gen_pallas(ki_flat, params["w1f"], params["b1f"],
                                params["w2"], params["b2"])   # bf16
    # exact PyTorch `.view(B, K*K, nH, nW, G)` (row-major reinterpretation)
    kernel_view = kn_flat.reshape(B, KK, nH, nW, G)
    kn = kn_flat.reshape(B, KK * G, nH, nW)

    # padded / phase-decomposed input; the unfold is fused into the kernel.
    x_ph = build_phases(x, K, s)

    out = involution_pallas(x_ph, kn, C=C, G=G, K=K, stride=s, nH=nH, nW=nW)
    return out, kernel_view


# ---------------------------------------------------------------------------
# Pure-JAX reference (literal module semantics, emulating the same bf16
# quantization points as the Pallas path) for correctness checking
# ---------------------------------------------------------------------------
def reference_forward(x, params, *, channel, group_number, kernel_size,
                      stride, reduction_ratio):
    B, C, H, W = x.shape
    G, K, s = group_number, kernel_size, stride
    nH, nW = H // s, W // s
    KK = K * K
    CG = C // G

    def bf(a):  # emulate a bf16 round-trip
        return a.astype(jnp.bfloat16).astype(jnp.float32)

    ki = avg_pool2d(x, s) if s > 1 else x
    xf = bf(ki).transpose(0, 2, 3, 1).reshape(-1, C)
    w1 = bf(params["w1f"])
    w2 = bf(params["w2"])
    h = jnp.maximum(
        jnp.dot(xf, w1.T, precision=lax.Precision.HIGHEST) + params["b1f"][:, 0],
        0.0)
    kf = jnp.dot(bf(h), w2.T, precision=lax.Precision.HIGHEST) + params["b2"][:, 0]
    kf = bf(kf)                                          # kn is stored in bf16
    kernel_raw = kf.reshape(B, nH, nW, KK * G).transpose(0, 3, 1, 2)
    kernel_view = kernel_raw.reshape(B, KK, nH, nW, G)
    pf, _, _ = unfold(x, K, s, K // 2)
    pv = pf.reshape(B, CG, KK, nH, nW, G)
    # The module's `kernel * input_patches` relies on PyTorch broadcasting; the
    # intended (shape-generic) semantics broadcast the per-batch kernel over
    # the C//G axis, which is what both this reference and the kernels do.
    out = (kernel_view[:, None] * pv).sum(axis=2)
    out = out.reshape(B, -1, nH, nW)
    return out, kernel_view


def _run_case(*, channel, group_number, kernel_size, stride, reduction_ratio,
              B, H, W, seed):
    key = jax.random.PRNGKey(seed)
    kx, kp = jax.random.split(key)
    x = jax.random.normal(kx, (B, channel, H, W), jnp.float32)
    params = init_params(kp, channel, group_number, kernel_size, reduction_ratio)
    cfg = dict(channel=channel, group_number=group_number,
               kernel_size=kernel_size, stride=stride,
               reduction_ratio=reduction_ratio)

    out, kern = involution_forward(x, params, **cfg)
    jax.block_until_ready((out, kern))
    ref_out, ref_kern = reference_forward(x, params, **cfg)

    nH, nW = H // stride, W // stride
    assert out.shape == (B, channel, nH, nW), out.shape
    assert kern.shape == (B, kernel_size * kernel_size, nH, nW, group_number), kern.shape
    err_k = float(jnp.max(jnp.abs(kern.astype(jnp.float32) - ref_kern)))
    err_o = float(jnp.max(jnp.abs(out.astype(jnp.float32) - ref_out)))
    # Tolerances sized for rare bf16 rounding-tie flips between the MXU path
    # and the f32-emulated reference; genuine index/algebra bugs are O(1).
    assert err_k < 2e-2, ("kernel mismatch", err_k)
    assert err_o < 6e-2, ("output mismatch", err_o)


if __name__ == "__main__":
    # Main config (stride=1).
    _run_case(channel=4, group_number=2, kernel_size=3, stride=1,
              reduction_ratio=2, B=2, H=16, W=16, seed=0)
    # stride=2 exercises the avg-pool path, the phase decomposition and the
    # lane-padding of L in kernel_gen.
    _run_case(channel=4, group_number=2, kernel_size=3, stride=2,
              reduction_ratio=2, B=2, H=16, W=16, seed=1)
    print("KERNEL_OK")
</pallas_src>

<mosaic_0001>
module attributes {stable_mosaic.version = 11 : i64} {
  func.func @_kernel_gen_kernel(%arg0: i32, %arg1: i32, %arg2: memref<1x4x256xbf16, #tpu.memory_space<vmem>>, %arg3: memref<2x4xbf16, #tpu.memory_space<vmem>>, %arg4: memref<2x1xf32, #tpu.memory_space<vmem>>, %arg5: memref<18x2xbf16, #tpu.memory_space<vmem>>, %arg6: memref<18x1xf32, #tpu.memory_space<vmem>>, %arg7: memref<1x18x256xbf16, #tpu.memory_space<vmem>>) attributes {dimension_semantics = [#tpu.dimension_semantics<parallel>, #tpu.dimension_semantics<parallel>], iteration_bounds = array<i64: 2, 1>, scalar_prefetch = 0 : i64, scratch_operands = 0 : i64, tpu.core_type = #tpu.core_type<tc>, window_params = [{transform_indices = @transform_0, window_bounds = array<i64: 1, 4, 256>}, {pipeline_mode = #tpu.pipeline_mode<synchronous>, transform_indices = @transform_1, window_bounds = array<i64: 2, 4>}, {pipeline_mode = #tpu.pipeline_mode<synchronous>, transform_indices = @transform_2, window_bounds = array<i64: 2, 1>}, {pipeline_mode = #tpu.pipeline_mode<synchronous>, transform_indices = @transform_3, window_bounds = array<i64: 18, 2>}, {pipeline_mode = #tpu.pipeline_mode<synchronous>, transform_indices = @transform_4, window_bounds = array<i64: 18, 1>}, {transform_indices = @transform_5, window_bounds = array<i64: 1, 18, 256>}]} {
    %c0 = arith.constant 0 : index
    %c0_0 = arith.constant 0 : index
    %c0_1 = arith.constant 0 : index
    %0 = vector.load %arg2[%c0, %c0_0, %c0_1] : memref<1x4x256xbf16, #tpu.memory_space<vmem>>, vector<1x4x256xbf16>
    %1 = vector.shape_cast %0 : vector<1x4x256xbf16> to vector<4x256xbf16>
    %c0_2 = arith.constant 0 : index
    %c0_3 = arith.constant 0 : index
    %2 = vector.load %arg3[%c0_2, %c0_3] : memref<2x4xbf16, #tpu.memory_space<vmem>>, vector<2x4xbf16>
    %cst = arith.constant dense<0.000000e+00> : vector<2x256xf32>
    %3 = tpu.matmul %2, %1, %cst {dimension_numbers = #tpu.dot_dimension_numbers<[1], [0], [0], [1], [0, 0, 1, 1], [], []>} : vector<2x4xbf16>, vector<4x256xbf16>, vector<2x256xf32> -> vector<2x256xf32>
    %c0_4 = arith.constant 0 : index
    %c0_5 = arith.constant 0 : index
    %4 = vector.load %arg4[%c0_4, %c0_5] : memref<2x1xf32, #tpu.memory_space<vmem>>, vector<2x1xf32>
    %5 = vector.broadcast %4 : vector<2x1xf32> to vector<2x256xf32>
    %6 = arith.addf %3, %5 : vector<2x256xf32>
    %cst_6 = arith.constant 0.000000e+00 : f32
    %7 = vector.broadcast %cst_6 : f32 to vector<2x256xf32>
    %8 = arith.maximumf %6, %7 : vector<2x256xf32>
    %9 = arith.truncf %8 : vector<2x256xf32> to vector<2x256xbf16>
    %c0_7 = arith.constant 0 : index
    %c0_8 = arith.constant 0 : index
    %10 = vector.load %arg5[%c0_7, %c0_8] : memref<18x2xbf16, #tpu.memory_space<vmem>>, vector<18x2xbf16>
    %cst_9 = arith.constant dense<0.000000e+00> : vector<18x256xf32>
    %11 = tpu.matmul %10, %9, %cst_9 {dimension_numbers = #tpu.dot_dimension_numbers<[1], [0], [0], [1], [0, 0, 1, 1], [], []>} : vector<18x2xbf16>, vector<2x256xbf16>, vector<18x256xf32> -> vector<18x256xf32>
    %c0_10 = arith.constant 0 : index
    %c0_11 = arith.constant 0 : index
    %12 = vector.load %arg6[%c0_10, %c0_11] : memref<18x1xf32, #tpu.memory_space<vmem>>, vector<18x1xf32>
    %13 = vector.broadcast %12 : vector<18x1xf32> to vector<18x256xf32>
    %14 = arith.addf %11, %13 : vector<18x256xf32>
    %15 = arith.truncf %14 : vector<18x256xf32> to vector<18x256xbf16>
    %c0_12 = arith.constant 0 : index
    %c0_13 = arith.constant 0 : index
    %c0_14 = arith.constant 0 : index
    %16 = vector.load %arg7[%c0_12, %c0_13, %c0_14] : memref<1x18x256xbf16, #tpu.memory_space<vmem>>, vector<1x18x256xbf16>
    %17 = vector.shape_cast %16 : vector<1x18x256xbf16> to vector<18x256xbf16>
    %18 = vector.shape_cast %15 : vector<18x256xbf16> to vector<1x18x256xbf16>
    tpu.vector_store %arg7[%c0_12, %c0_13, %c0_14], %18 {strides = array<i32>} : memref<1x18x256xbf16, #tpu.memory_space<vmem>>, vector<1x18x256xbf16>,
    return
  }
  func.func @transform_0(%arg0: i32, %arg1: i32) -> (i32, i32, i32) {
    %c0_i32 = arith.constant 0 : i32
    %c0_i32_0 = arith.constant 0 : i32
    return %arg0, %c0_i32, %arg1 : i32, i32, i32
  }
  func.func @transform_1(%arg0: i32, %arg1: i32) -> (i32, i32) {
    %c0_i32 = arith.constant 0 : i32
    %c0_i32_0 = arith.constant 0 : i32
    %c0_i32_1 = arith.constant 0 : i32
    return %c0_i32, %c0_i32_0 : i32, i32
  }
  func.func @transform_2(%arg0: i32, %arg1: i32) -> (i32, i32) {
    %c0_i32 = arith.constant 0 : i32
    %c0_i32_0 = arith.constant 0 : i32
    %c0_i32_1 = arith.constant 0 : i32
    return %c0_i32, %c0_i32_0 : i32, i32
  }
  func.func @transform_3(%arg0: i32, %arg1: i32) -> (i32, i32) {
    %c0_i32 = arith.constant 0 : i32
    %c0_i32_0 = arith.constant 0 : i32
    %c0_i32_1 = arith.constant 0 : i32
    return %c0_i32, %c0_i32_0 : i32, i32
  }
  func.func @transform_4(%arg0: i32, %arg1: i32) -> (i32, i32) {
    %c0_i32 = arith.constant 0 : i32
    %c0_i32_0 = arith.constant 0 : i32
    %c0_i32_1 = arith.constant 0 : i32
    return %c0_i32, %c0_i32_0 : i32, i32
  }
  func.func @transform_5(%arg0: i32, %arg1: i32) -> (i32, i32, i32) {
    %c0_i32 = arith.constant 0 : i32
    %c0_i32_0 = arith.constant 0 : i32
    return %arg0, %c0_i32, %arg1 : i32, i32, i32
  }
}

</mosaic_0001>

<llo_original>
// kernel: tpu_custom_call.1
$region0: #{tpu_custom_call.1}
  #allocation0 [shape = 'u32[]', space=smem, size = 0x4, offset = 0x4, fixed_abs, tag = 'smem constant byte address 0x4 - core index']
  #allocation1 [shape = 'u32[144,128]{1,0:T(1,128)}', space=vmem, size = 0x12000, scoped, tag = 'internal scratch']
  %s0 = inlined_call_operand.vmem [shape: bf16[2,4,256], index: 0, kind: input, shape index: {}]
  %s1 = inlined_call_operand.vmem [shape: bf16[2,4], index: 1, kind: input, shape index: {}]
  %s2 = inlined_call_operand.vmem [shape: f32[2,1], index: 2, kind: input, shape index: {}]
  %s3 = inlined_call_operand.vmem [shape: bf16[18,2], index: 3, kind: input, shape index: {}]
  %s4 = inlined_call_operand.vmem [shape: f32[18,1], index: 4, kind: input, shape index: {}]
  %s5 = inlined_call_operand.vmem [shape: bf16[2,18,256], index: 5, kind: output, shape index: {}]
  %s6 = sld [smem:[#allocation0]]
  $region53: #{tpu_custom_call.1} parent=0
    _
  %s8 = ssub.s32 1, %s6
  %s9 = scalar_select 0, %s8, %s6
  loop: start=0, step=1, limit=4
  $region2: #{tpu_custom_call.1} parent=0 // loop_pre_header
    _
  $region3: #{tpu_custom_call.1} parent=0 // loop_header
    %s11 = sphi 0, %s15
    %p12 = scmp.ge.s32.totalorder %s11, 4
    %s18 = sphi 0, %s30
    %s19 = sphi 0, %s26
    %s20 = sphi 0, %s18
    %s21 = sphi 0, %s19
    %s22 = sphi 0, %s20
    %s23 = sphi 0, %s21
    %s35 = sphi 0, %s37
    %s38 = sphi 0, %s35
    %s39 = sphi 0, %s38
    %s55 = sphi 0, %s39
    %s59 = sphi 0, %s59
    %s61 = sphi 0, %s59
    %s62 = sphi 0, %s61
    %s76 = sphi 0, %s62
    %s80 = sphi 0, %s80
    %s82 = sphi 0, %s80
    %s83 = sphi 0, %s82
    %s97 = sphi 0, %s83
    %s101 = sphi 0, %s101
    %s103 = sphi 0, %s101
    %s104 = sphi 0, %s103
    %s118 = sphi 0, %s104
    %s122 = sphi 0, %s122
    %s124 = sphi 0, %s122
    %s125 = sphi 0, %s124
    %s139 = sphi 0, %s125
    %s147 = sphi 0, %s149
    %s150 = sphi 0, %s147
    %s151 = sphi 0, %s150
    %s167 = sphi 0, %s151
  $region4: #{tpu_custom_call.1} parent=0 // loop_header_branch
    %14 = sbr.rel (%p12) target = $region8
  $region5: #{tpu_custom_call.1} parent=0 // loop_body
    %s16 = ssub.s32 %s11, 1
    %s17 = ssub.s32 %s11, 2
    %s24 = sadd.s32 1, %s19
    %p25 = scmp.ge.s32.totalorder %s24, 1
    %s26 = scalar_select %p25, 0, %s24
    %s27 = sadd.s32 1, %s18
    %s28 = scalar_select %p25, %s27, %s18
    %p29 = scmp.ge.s32.totalorder %s28, 2
    %s30 = scalar_select %p29, 0, %s28
    %s31 = ssub.s32 %s18, %s30
    %s32 = ssub.s32 %s19, %s26
    %s33 = sor.u32 %s31, %s32
    %p34 = scmp.eq.s32.totalorder %s33, 0
    %s36 = sadd.s32 %s35, 1
    %s37 = scalar_select %p34, %s35, %s36
    %p40 = pneg %p34
    %p41 = scmp.eq.s32.totalorder %s11, 1
    %p42 = por %p40, %p41
    %p43 = scmp.ne.s32.totalorder %s35, %s38
    %p44 = scmp.eq.s32.totalorder %s11, 0
    %p45 = por %p43, %p44
    %p46 = scmp.ne.s32.totalorder %s35, %s38
    %p47 = scmp.eq.s32.totalorder %s16, 1
    %p48 = por %p46, %p47
    %p49 = scmp.ne.s32.totalorder %s38, %s39
    %p50 = scmp.eq.s32.totalorder %s16, 0
    %p51 = por %p49, %p50
    %p52 = scmp.ne.s32.totalorder %s38, %s39
    %p53 = scmp.eq.s32.totalorder %s17, 1
    %p54 = por %p52, %p53
    %p56 = scmp.ne.s32.totalorder %s39, %s55
    %p57 = scmp.eq.s32.totalorder %s17, 0
    %p58 = por %p56, %p57
    %s60 = sadd.s32 %s59, 1
    %p63 = scmp.eq.s32.totalorder %s11, 1
    %p64 = scmp.ne.s32.totalorder %s59, %s61
    %p65 = scmp.eq.s32.totalorder %s11, 0
    %p66 = por %p64, %p65
    %p67 = scmp.ne.s32.totalorder %s59, %s61
    %p68 = scmp.eq.s32.totalorder %s16, 1
    %p69 = por %p67, %p68
    %p70 = scmp.ne.s32.totalorder %s61, %s62
    %p71 = scmp.eq.s32.totalorder %s16, 0
    %p72 = por %p70, %p71
    %p73 = scmp.ne.s32.totalorder %s61, %s62
    %p74 = scmp.eq.s32.totalorder %s17, 1
    %p75 = por %p73, %p74
    %p77 = scmp.ne.s32.totalorder %s62, %s76
    %p78 = scmp.eq.s32.totalorder %s17, 0
    %p79 = por %p77, %p78
    %s81 = sadd.s32 %s80, 1
    %p84 = scmp.eq.s32.totalorder %s11, 1
    %p85 = scmp.ne.s32.totalorder %s80, %s82
    %p86 = scmp.eq.s32.totalorder %s11, 0
    %p87 = por %p85, %p86
    %p88 = scmp.ne.s32.totalorder %s80, %s82
    %p89 = scmp.eq.s32.totalorder %s16, 1
    %p90 = por %p88, %p89
    %p91 = scmp.ne.s32.totalorder %s82, %s83
    %p92 = scmp.eq.s32.totalorder %s16, 0
    %p93 = por %p91, %p92
    %p94 = scmp.ne.s32.totalorder %s82, %s83
    %p95 = scmp.eq.s32.totalorder %s17, 1
    %p96 = por %p94, %p95
    %p98 = scmp.ne.s32.totalorder %s83, %s97
    %p99 = scmp.eq.s32.totalorder %s17, 0
    %p100 = por %p98, %p99
    %s102 = sadd.s32 %s101, 1
    %p105 = scmp.eq.s32.totalorder %s11, 1
    %p106 = scmp.ne.s32.totalorder %s101, %s103
    %p107 = scmp.eq.s32.totalorder %s11, 0
    %p108 = por %p106, %p107
    %p109 = scmp.ne.s32.totalorder %s101, %s103
    %p110 = scmp.eq.s32.totalorder %s16, 1
    %p111 = por %p109, %p110
    %p112 = scmp.ne.s32.totalorder %s103, %s104
    %p113 = scmp.eq.s32.totalorder %s16, 0
    %p114 = por %p112, %p113
    %p115 = scmp.ne.s32.totalorder %s103, %s104
    %p116 = scmp.eq.s32.totalorder %s17, 1
    %p117 = por %p115, %p116
    %p119 = scmp.ne.s32.totalorder %s104, %s118
    %p120 = scmp.eq.s32.totalorder %s17, 0
    %p121 = por %p119, %p120
    %s123 = sadd.s32 %s122, 1
    %p126 = scmp.eq.s32.totalorder %s11, 1
    %p127 = scmp.ne.s32.totalorder %s122, %s124
    %p128 = scmp.eq.s32.totalorder %s11, 0
    %p129 = por %p127, %p128
    %p130 = scmp.ne.s32.totalorder %s122, %s124
    %p131 = scmp.eq.s32.totalorder %s16, 1
    %p132 = por %p130, %p131
    %p133 = scmp.ne.s32.totalorder %s124, %s125
    %p134 = scmp.eq.s32.totalorder %s16, 0
    %p135 = por %p133, %p134
    %p136 = scmp.ne.s32.totalorder %s124, %s125
    %p137 = scmp.eq.s32.totalorder %s17, 1
    %p138 = por %p136, %p137
    %p140 = scmp.ne.s32.totalorder %s125, %s139
    %p141 = scmp.eq.s32.totalorder %s17, 0
    %p142 = por %p140, %p141
    %s143 = ssub.s32 %s18, %s30
    %s144 = ssub.s32 %s19, %s26
    %s145 = sor.u32 %s143, %s144
    %p146 = scmp.eq.s32.totalorder %s145, 0
    %s148 = sadd.s32 %s147, 1
    %s149 = scalar_select %p146, %s147, %s148
    %p152 = pneg %p146
    %p153 = scmp.eq.s32.totalorder %s11, 1
    %p154 = por %p152, %p153
    %p155 = scmp.ne.s32.totalorder %s147, %s150
    %p156 = scmp.eq.s32.totalorder %s11, 0
    %p157 = por %p155, %p156
    %p158 = scmp.ne.s32.totalorder %s147, %s150
    %p159 = scmp.eq.s32.totalorder %s16, 1
    %p160 = por %p158, %p159
    %p161 = scmp.ne.s32.totalorder %s150, %s151
    %p162 = scmp.eq.s32.totalorder %s16, 0
    %p163 = por %p161, %p162
    %p164 = scmp.ne.s32.totalorder %s150, %s151
    %p165 = scmp.eq.s32.totalorder %s17, 1
    %p166 = por %p164, %p165
    %p168 = scmp.ne.s32.totalorder %s151, %s167
    %p169 = scmp.eq.s32.totalorder %s17, 0
    %p170 = por %p168, %p169
    %p171 = scmp.le.s32.totalorder 1, %s11
    %p172 = scmp.lt.s32.totalorder %s11, 3
    %p173 = pnand %p171, %p172
    %p174 = pneg %p173
    // Predicated region
    $region9: #{tpu_custom_call.1} parent=5 // pred_check
      _
    $region10: #{tpu_custom_call.1} parent=5 // pred_check_branch
      %176 = sbr.rel (%p173) target = $region12
    $region11: #{tpu_custom_call.1} parent=5 // pred_region
      %s177 = ssub.s32 %s11, 1
      // Predicated region
      $region13: #{tpu_custom_call.1} parent=11 // pred_check
        %p178 = pneg %p72
      $region14: #{tpu_custom_call.1} parent=11 // pred_check_branch
        %180 = sbr.rel (%p178) target = $region16
      $region15: #{tpu_custom_call.1} parent=11 // pred_region
        _
      $region16: #{tpu_custom_call.1} parent=11 // pred_fallthru
        _
      // Predicated region
      $region17: #{tpu_custom_call.1} parent=11 // pred_check
        %p181 = pneg %p93
      $region18: #{tpu_custom_call.1} parent=11 // pred_check_branch
        %183 = sbr.rel (%p181) target = $region20
      $region19: #{tpu_custom_call.1} parent=11 // pred_region
        _
      $region20: #{tpu_custom_call.1} parent=11 // pred_fallthru
        _
      // Predicated region
      $region21: #{tpu_custom_call.1} parent=11 // pred_check
        %p184 = pneg %p114
      $region22: #{tpu_custom_call.1} parent=11 // pred_check_branch
        %186 = sbr.rel (%p184) target = $region24
      $region23: #{tpu_custom_call.1} parent=11 // pred_region
        _
      $region24: #{tpu_custom_call.1} parent=11 // pred_fallthru
        _
      // Predicated region
      $region25: #{tpu_custom_call.1} parent=11 // pred_check
        %p187 = pneg %p135
      $region26: #{tpu_custom_call.1} parent=11 // pred_check_branch
        %189 = sbr.rel (%p187) target = $region28
      $region27: #{tpu_custom_call.1} parent=11 // pred_region
        _
      $region28: #{tpu_custom_call.1} parent=11 // pred_fallthru
        _
    $region12: #{tpu_custom_call.1} parent=5 // pred_fallthru
      _
    %p190 = scmp.lt.s32.totalorder %s11, 2
    // Predicated region
    $region29: #{tpu_custom_call.1} parent=5 // pred_check
      %p191 = pneg %p190
    $region30: #{tpu_custom_call.1} parent=5 // pred_check_branch
      %193 = sbr.rel (%p191) target = $region32
    $region31: #{tpu_custom_call.1} parent=5 // pred_region
      // Predicated region
      $region33: #{tpu_custom_call.1} parent=31 // pred_check
        %p194 = pneg %p45
      $region34: #{tpu_custom_call.1} parent=31 // pred_check_branch
        %196 = sbr.rel (%p194) target = $region36
      $region35: #{tpu_custom_call.1} parent=31 // pred_region
        %s197 = smul.u32 2, %s19
        %p198 = scmp.lt.s32.totalorder %s18, 1
        %s199 = scalar_select %p198, %s18, 1
        %p200 = scmp.lt.s32.totalorder %s197, 1
        %s201 = scalar_select %p200, %s197, 1
        %s202 = smul.addr %s199, 2
        %s203 = sadd.s32 %s201, %s202
        %s204 = smul.addr %s203, 2
        %s205 = scalar_lea.vmem %s0, %s204
        %s206 = smul.u32 2, %s19
      $region36: #{tpu_custom_call.1} parent=31 // pred_fallthru
        _
    $region32: #{tpu_custom_call.1} parent=5 // pred_fallthru
      _
    %p207 = scmp.le.s32.totalorder 1, %s11
    %p208 = scmp.lt.s32.totalorder %s11, 3
    %p209 = pnand %p207, %p208
    %p210 = pneg %p209
    // Predicated region
    $region37: #{tpu_custom_call.1} parent=5 // pred_check
      _
    $region38: #{tpu_custom_call.1} parent=5 // pred_check_branch
      %212 = sbr.rel (%p209) target = $region40
    $region39: #{tpu_custom_call.1} parent=5 // pred_region
      %s213 = ssub.s32 %s11, 1
      %s214 = smul.u32 2, %s21
      %p215 = scmp.lt.s32.totalorder %s20, 1
      %s216 = scalar_select %p215, %s20, 1
      %p217 = scmp.lt.s32.totalorder %s214, 1
      %s218 = scalar_select %p217, %s214, 1
      %s219 = smul.addr %s216, 2
      %s220 = sadd.s32 %s218, %s219
      %s221 = smul.addr %s220, 2
      %s222 = scalar_lea.vmem %s0, %s221
      %p223 = pneg %p51
      %p224 = pneg %p48
      %p225 = pneg %p72
      %p226 = pneg %p69
      %p227 = pneg %p93
      %p228 = pneg %p90
      %p229 = pneg %p114
      %p230 = pneg %p111
      %p231 = pneg %p135
      %p232 = pneg %p132
      %p233 = pneg %p163
      %p234 = pneg %p160
      %s235 = smul.u32 2, %s21
      %p236 = scmp.lt.s32.totalorder %s20, 1
      %s237 = scalar_select %p236, %s20, 1
      %p238 = scmp.lt.s32.totalorder %s235, 1
      %s239 = scalar_select %p238, %s235, 1
      %s240 = smul.addr %s237, 6
      %s241 = sadd.s32 %s239, %s240
      %s242 = smul.addr %s241, 4
      %s243 = scalar_lea.vmem %s5, %s242
      %s244 = smul.u32 2, %s21
      %p245 = scmp.lt.s32.totalorder %s20, 1
      %s246 = scalar_select %p245, %s20, 1
      %p247 = scmp.lt.s32.totalorder %s244, 1
      %s248 = scalar_select %p247, %s244, 1
      %s249 = smul.addr %s246, 2
      %s250 = sadd.s32 %s248, %s249
      %s251 = smul.addr %s250, 2
      %s252 = scalar_lea.vmem %s0, %s251
      %s253 = smul.u32 2, %s21
      %s254 = smul.u32 2, %s21
      %p255 = scmp.lt.s32.totalorder %s20, 1
      %s256 = scalar_select %p255, %s20, 1
      %p257 = scmp.lt.s32.totalorder %s254, 1
      %s258 = scalar_select %p257, %s254, 1
      %s259 = smul.addr %s256, 6
      %s260 = sadd.s32 %s258, %s259
      %s261 = smul.addr %s260, 4
      %s262 = scalar_lea.vmem %s5, %s261
      %s263 = smul.u32 2, %s21
      %v265 = vld [vmem:[%s252] sm:$0xf]
      %v266 = vld [vmem:[%s1] sm:$0x1]
      %v267 = vld [vmem:[%s2] sm:$0x3]
      %269 = vset.pattern.permute.xlu0 0
      %270 = vperm.xlu0 %269, %v267
      %v271 = vpop.permute.xlu0 %270
      %v275 = vunpack.c.l.s4 1983009808
      %v276 = vunpack.c.0.s8 %v275
      %v277 = vlaneseq
      %v278 = vshrl.u32 %v277, 7
      %v279 = vsub.s32 %v276, %v278
      %v280 = vrot.slane %v265, %v279
      %v281 = vcombine.high %v280, %v280
      %vm282 = vcmask 31744
      %v284 = vsel %vm282, %v266, 0
      %vm286 = vcmask 1041408
      %v288 = vsel %vm286, %v280, 0
      %v291 = vsel %vm286, %v281, 0
      %293 = vmatprep.subr.bf16.mxu0 %v291
      %294 = vmatpush1.bf16.msra.mxu0 %v288
      %295 = vmatprep.subr.bf16.mxu0 0
      %296 = vmatpush1.bf16.msra.mxu0 0
      %297 = vmatprep.subr.bf16.mxu0 0
      %298 = vmatpush1.bf16.msra.mxu0 0
      %299 = vmatprep.subr.bf16.mxu0 0
      %300 = vmatpush1.bf16.msra.mxu0 0
      %301 = vmatprep.subr.bf16.mxu0 0
      %302 = vmatpush1.bf16.msra.mxu0 0
      %303 = vmatprep.subr.bf16.mxu0 0
      %304 = vmatpush1.bf16.msra.mxu0 0
      %305 = vmatprep.subr.bf16.mxu0 0
      %306 = vmatpush1.bf16.msra.mxu0 0
      %307 = vmatprep.subr.bf16.mxu0 0
      %308 = vmatpush1.bf16.msra.mxu0 0
      %309 = vmatprep.subr.bf16.mxu0 0
      %310 = vmatpush1.bf16.msra.mxu0 0
      %311 = vmatprep.subr.bf16.mxu0 0
      %312 = vmatpush1.bf16.msra.mxu0 0
      %313 = vmatprep.subr.bf16.mxu0 0
      %314 = vmatpush1.bf16.msra.mxu0 0
      %315 = vmatprep.subr.bf16.mxu0 0
      %316 = vmatpush1.bf16.msra.mxu0 0
      %317 = vmatprep.subr.bf16.mxu0 0
      %318 = vmatpush1.bf16.msra.mxu0 0
      %319 = vmatprep.subr.bf16.mxu0 0
      %320 = vmatpush1.bf16.msra.mxu0 0
      %321 = vmatprep.subr.bf16.mxu0 0
      %322 = vmatpush1.bf16.msra.mxu0 0
      %323 = vmatprep.subr.bf16.mxu0 0
      %324 = vmatpush1.bf16.msra.mxu0 0
      %325 = vmatprep.mubr.bf16.mxu0 0
      %326 = vmatmul.mubr.bf16.gmra.mrb[0].mxu0 %v284
      %v327 = vpop.f32.mrb[0].mxu0
      %v328 = vadd.f32 %v271, %v327
      %v329 = vpop.f32.mrb[0].mxu0
      %v330 = vadd.f32 %v271, %v329
      %v331 = vpop.f32.mrb[0].mxu0
      %v332 = vpop.f32.mrb[0].mxu0
      %333 = vdwg.mxu0
      %v334 = vmax.f32 %v328, 0.0
      %v335 = vmax.f32 %v330, 0.0
      %v336 = vpack.c.bf16 %v334, %v334
      %v337 = vpack.c.bf16 %v335, %v335
      %v338 = vld [vmem:[%s3] sm:$0xf]
      %v339 = vld [vmem:[%s3 + $0x4] sm:$0xf]
      %v340 = vld [vmem:[%s3 + $0x8] sm:$0x1]
      %v341 = vld [vmem:[%s4] sm:$0xff]
      %v342 = vld [vmem:[%s4 + $0x8] sm:$0xff]
      %v343 = vld [vmem:[%s4 + $0x10] sm:$0x3]
      %345 = vset.pattern.permute.xlu0 0
      %346 = vperm.xlu0 %345, %v341
      %v347 = vpop.permute.xlu0 %346
      %350 = vset.pattern.permute.xlu0 0
      %351 = vperm.xlu0 %350, %v342
      %v352 = vpop.permute.xlu0 %351
      %355 = vset.pattern.permute.xlu0 0
      %356 = vperm.xlu0 %355, %v343
      %v357 = vpop.permute.xlu0 %356
      %v362 = vunpack.c.l.b16 %v338
      %v363 = vunpack.c.l.b16 %v339
      %v364 = vunpack.c.l.b16 %v340
      %v365 = vpack.c.b16 %v363, %v362
      %v366 = vpack.c.b16 %v364, %v364
      %vm367 = vcmask 15360
      %v369 = vsel %vm367, %v365, 0
      %v372 = vsel %vm367, %v366, 0
      %vm374 = vcmask 1040384
      %v376 = vsel %vm374, %v336, 0
      %v379 = vsel %vm374, %v337, 0
      %381 = vmatprep.subr.bf16.mxu0 %v379
      %382 = vmatpush1.bf16.msra.mxu0 %v376
      %383 = vmatprep.subr.bf16.mxu0 0
      %384 = vmatpush1.bf16.msra.mxu0 0
      %385 = vmatprep.subr.bf16.mxu0 0
      %386 = vmatpush1.bf16.msra.mxu0 0
      %387 = vmatprep.subr.bf16.mxu0 0
      %388 = vmatpush1.bf16.msra.mxu0 0
      %389 = vmatprep.subr.bf16.mxu0 0
      %390 = vmatpush1.bf16.msra.mxu0 0
      %391 = vmatprep.subr.bf16.mxu0 0
      %392 = vmatpush1.bf16.msra.mxu0 0
      %393 = vmatprep.subr.bf16.mxu0 0
      %394 = vmatpush1.bf16.msra.mxu0 0
      %395 = vmatprep.subr.bf16.mxu0 0
      %396 = vmatpush1.bf16.msra.mxu0 0
      %397 = vmatprep.subr.bf16.mxu0 0
      %398 = vmatpush1.bf16.msra.mxu0 0
      %399 = vmatprep.subr.bf16.mxu0 0
      %400 = vmatpush1.bf16.msra.mxu0 0
      %401 = vmatprep.subr.bf16.mxu0 0
      %402 = vmatpush1.bf16.msra.mxu0 0
      %403 = vmatprep.subr.bf16.mxu0 0
      %404 = vmatpush1.bf16.msra.mxu0 0
      %405 = vmatprep.subr.bf16.mxu0 0
      %406 = vmatpush1.bf16.msra.mxu0 0
      %407 = vmatprep.subr.bf16.mxu0 0
      %408 = vmatpush1.bf16.msra.mxu0 0
      %409 = vmatprep.subr.bf16.mxu0 0
      %410 = vmatpush1.bf16.msra.mxu0 0
      %411 = vmatprep.subr.bf16.mxu0 0
      %412 = vmatpush1.bf16.msra.mxu0 0
      %413 = vmatprep.mubr.bf16.mxu0 0
      %414 = vmatmul.mubr.bf16.gmra.mrb[0].mxu0 %v369
      %v415 = vpop.f32.mrb[0].mxu0
      %v416 = vadd.f32 %v347, %v415
      %v417 = vpop.f32.mrb[0].mxu0
      %v418 = vadd.f32 %v347, %v417
      %v419 = vpop.f32.mrb[0].mxu0
      %v420 = vadd.f32 %v352, %v419
      %v421 = vpop.f32.mrb[0].mxu0
      %v422 = vadd.f32 %v352, %v421
      %423 = vmatprep.mubr.bf16.mxu0 0
      %424 = vmatmul.mubr.bf16.gmra.mrb[0].mxu0 %v372
      %v425 = vpop.f32.mrb[0].mxu0
      %v426 = vadd.f32 %v357, %v425
      %v427 = vpop.f32.mrb[0].mxu0
      %v428 = vadd.f32 %v357, %v427
      %v429 = vpop.f32.mrb[0].mxu0
      %v430 = vpop.f32.mrb[0].mxu0
      %431 = vdwg.mxu0
      %v432 = vpack.c.bf16 %v420, %v416
      %v433 = vpack.c.bf16 %v422, %v418
      %v434 = vpack.c.bf16 %v426, %v426
      %v435 = vpack.c.bf16 %v428, %v428
      %v440 = vunpack.c.l.b16 %v432
      %v441 = vunpack.c.l.b16 %v433
      %v442 = vunpack.c.h.b16 %v432
      %v443 = vunpack.c.h.b16 %v433
      %v444 = vunpack.c.l.b16 %v434
      %v445 = vunpack.c.l.b16 %v435
      %v446 = vpack.c.b16 %v441, %v440
      %v447 = vpack.c.b16 %v443, %v442
      %v448 = vpack.c.b16 %v445, %v444
      %452 = vst [vmem:[%s262] sm:$0xff] %v446
      %453 = vst [vmem:[%s262 + $0x8] sm:$0xff] %v447
      %454 = vst [vmem:[%s262 + $0x10] sm:$0x11] %v448
      %s455 = smul.u32 2, %s21
      %p456 = scmp.lt.s32.totalorder %s20, 1
      %s457 = scalar_select %p456, %s20, 1
      %p458 = scmp.lt.s32.totalorder %s455, 1
      %s459 = scalar_select %p458, %s455, 1
      %s460 = smul.addr %s457, 6
      %s461 = sadd.s32 %s459, %s460
      %s462 = smul.addr %s461, 4
      %s463 = scalar_lea.vmem %s5, %s462
      // Predicated region
      $region41: #{tpu_custom_call.1} parent=39 // pred_check
        %p464 = pneg %p160
      $region42: #{tpu_custom_call.1} parent=39 // pred_check_branch
        %466 = sbr.rel (%p464) target = $region44
      $region43: #{tpu_custom_call.1} parent=39 // pred_region
        %s467 = smul.u32 2, %s21
      $region44: #{tpu_custom_call.1} parent=39 // pred_fallthru
        _
    $region40: #{tpu_custom_call.1} parent=5 // pred_fallthru
      _
    %p468 = scmp.le.s32.totalorder 2, %s11
    // Predicated region
    $region45: #{tpu_custom_call.1} parent=5 // pred_check
      %p469 = pneg %p468
    $region46: #{tpu_custom_call.1} parent=5 // pred_check_branch
      %471 = sbr.rel (%p469) target = $region48
    $region47: #{tpu_custom_call.1} parent=5 // pred_region
      %s472 = ssub.s32 %s11, 2
      // Predicated region
      $region49: #{tpu_custom_call.1} parent=47 // pred_check
        %p473 = pneg %p166
      $region50: #{tpu_custom_call.1} parent=47 // pred_check_branch
        %475 = sbr.rel (%p473) target = $region52
      $region51: #{tpu_custom_call.1} parent=47 // pred_region
        %s476 = smul.u32 2, %s23
        %p477 = scmp.lt.s32.totalorder %s22, 1
        %s478 = scalar_select %p477, %s22, 1
        %p479 = scmp.lt.s32.totalorder %s476, 1
        %s480 = scalar_select %p479, %s476, 1
        %s481 = smul.addr %s478, 6
        %s482 = sadd.s32 %s480, %s481
        %s483 = smul.addr %s482, 4
        %s484 = scalar_lea.vmem %s5, %s483
      $region52: #{tpu_custom_call.1} parent=47 // pred_fallthru
        _
    $region48: #{tpu_custom_call.1} parent=5 // pred_fallthru
      _
  $region6: #{tpu_custom_call.1} parent=0 // loop_footer
    %s15 = sadd.s32 1, %s11
  $region7: #{tpu_custom_call.1} parent=0 // loop_footer_branch
    %10 = sbr.rel target = $region3
  $region8: #{tpu_custom_call.1} parent=0 // loop_exit
    _

</llo_original>
